<compile_context>
chip_gen: v7x
topology: tpu7x:2x2x1
jax: 0.10.0
libtpu: 0.0.40
codegen_flags: <defaults>
</compile_context>

<pallas_src>
import functools

import jax
import jax.numpy as jnp
from jax.experimental import pallas as pl
from jax.experimental.pallas import tpu as pltpu


def _dp_shard_kernel(x_ref, w_ref, b_ref, o_ref, *, cin, cout, hw):
    """One (virtual device, batch tile) step of DataParallel(Conv2d 1x1).

    x_ref: (rows, Cin*HW)  VMEM  -- this replica's scatter() slab (lane-dense)
    w_ref: (Cout, Cin)     SMEM  -- replicated module weight (scalars)
    b_ref: (Cout,)         SMEM  -- replicated module bias (scalars)
    o_ref: (rows, Cout*HW) VMEM  -- this slab of the gathered output
    """
    for o in range(cout):  # static, unrolled: Cout = 8
        # bias + first channel term (scalar-broadcast VPU ops, f32 accumulation)
        acc = b_ref[o] + w_ref[o, 0] * x_ref[:, 0:hw]
        for c in range(1, cin):  # static, unrolled: Cin = 4 -> stays off the MXU
            acc = acc + w_ref[o, c] * x_ref[:, c * hw:(c + 1) * hw]
        # 128-lane-aligned, lane-dense store of this output channel's slice
        o_ref[:, o * hw:(o + 1) * hw] = acc.astype(o_ref.dtype)


def data_parallel_conv1x1(x_nchw, weight, bias, num_devices=2, out_dtype=None):
    """Emulates DataParallel(Conv2d(Cin, Cout, 1)).forward(x) on TPU.

    x_nchw : (B, Cin, H, W)    float32
    weight : (Cout, Cin, 1, 1) float32   (PyTorch conv weight layout)
    bias   : (Cout,)           float32
    """
    B, Cin, H, W = x_nchw.shape
    Cout = weight.shape[0]
    # TODO(synk): torch scatter(dim=0) allows an uneven final chunk; we require
    # equal chunks, which changes semantics for non-divisible batch sizes.
    assert B % num_devices == 0, "scatter(dim=0) chunks must be equal here"
    Bs = B // num_devices
    HW = H * W
    assert HW % 128 == 0, "channel slices must stay 128-lane aligned"
    out_dtype = x_nchw.dtype if out_dtype is None else out_dtype

    # ---- pick a batch tile per grid step (fat blocks, VMEM-friendly) --------
    in_item = jnp.dtype(x_nchw.dtype).itemsize
    out_item = jnp.dtype(out_dtype).itemsize
    row_bytes = (Cin * in_item + Cout * out_item) * HW
    target_bytes = 1 << 20            # ~1 MiB of activations+output per step
    bt = Bs                           # default: whole device shard in one step
    if Bs > 8 and Bs * row_bytes > target_bytes:
        cand = max(8, (target_bytes // row_bytes) // 8 * 8)
        while cand >= 8 and Bs % cand != 0:
            cand -= 8                 # keep sub-tiles a multiple of 8 sublanes
        if cand >= 8:
            bt = cand
    nt = Bs // bt

    # ---- NCHW-native glue: pure reshapes, no transpose, no casts ------------
    x = x_nchw.reshape(num_devices, Bs, Cin * HW)   # scatter() view of the batch
    w = weight.reshape(Cout, Cin)                   # replicate(): tiny -> SMEM
    b = bias.reshape(Cout)

    bytes_accessed = (B * Cin * HW * in_item        # activations in
                      + Cout * Cin * 4 + Cout * 4   # params
                      + B * Cout * HW * out_item)   # output

    kernel = functools.partial(_dp_shard_kernel, cin=Cin, cout=Cout, hw=HW)

    out = pl.pallas_call(
        kernel,
        out_shape=jax.ShapeDtypeStruct((num_devices, Bs, Cout * HW), out_dtype),
        grid_spec=pltpu.PrefetchScalarGridSpec(
            num_scalar_prefetch=0,
            grid=(num_devices, nt),   # (DataParallel replica, batch tile)
            in_specs=[
                # scatter(inputs, device_ids, dim=0): slab d / batch tile t
                pl.BlockSpec((None, bt, Cin * HW), lambda d, t: (d, t, 0)),
                # replicate(module): params resident in SMEM across all steps
                pl.BlockSpec(memory_space=pltpu.MemorySpace.SMEM),
                pl.BlockSpec(memory_space=pltpu.MemorySpace.SMEM),
            ],
            # gather(outputs, output_device, dim=0): concat shards along dim 0
            out_specs=pl.BlockSpec((None, bt, Cout * HW), lambda d, t: (d, t, 0)),
        ),
        compiler_params=pltpu.CompilerParams(
            # replicas / batch tiles are independent -> shardable across the
            # 2 TensorCores on v7x; sequential loop on v5e/v6e.
            dimension_semantics=("parallel", "parallel"),
        ),
        cost_estimate=pl.CostEstimate(
            flops=2 * B * Cin * Cout * HW,
            transcendentals=0,
            bytes_accessed=bytes_accessed,
        ),
    )(x, w, b)

    # Glue: back to NCHW (pure reshape, no transpose, no extra HBM pass).
    return out.reshape(B, Cout, H, W)


if __name__ == "__main__":
    key = jax.random.PRNGKey(0)
    kx, kw, kb = jax.random.split(key, 3)

    B, Cin, H, W = 2, 4, 16, 16
    Cout = 8
    NUM_DEVICES = 2  # virtual device_ids for DataParallel scatter/gather

    x = jax.random.normal(kx, (B, Cin, H, W), dtype=jnp.float32)
    weight = jax.random.normal(kw, (Cout, Cin, 1, 1), dtype=jnp.float32) * 0.1
    bias = jax.random.normal(kb, (Cout,), dtype=jnp.float32) * 0.1

    y = data_parallel_conv1x1(x, weight, bias, num_devices=NUM_DEVICES)
    y = jax.block_until_ready(y)

    # Reference: the wrapped module applied to the whole batch
    # (DataParallel's scatter/apply/gather must reproduce it exactly).
    ref = jnp.einsum("bchw,oc->bohw", x, weight.reshape(Cout, Cin)) \
        + bias[None, :, None, None]
    assert y.shape == (B, Cout, H, W)
    # Pure f32 stream + f32 accumulation -> tight tolerance.
    assert jnp.allclose(y, ref, atol=1e-5, rtol=1e-5)

    # TODO(synk): _check_balance (device memory / SM-count imbalance warning)
    # has no Pallas analog; it only warns and does not affect forward math.
    print("KERNEL_OK")
</pallas_src>

<mosaic_0001>
module attributes {stable_mosaic.version = 11 : i64} {
  func.func @_dp_shard_kernel(%arg0: i32, %arg1: i32, %arg2: memref<1x1x1024xf32, #tpu.memory_space<vmem>>, %arg3: memref<8x4xf32, #tpu.memory_space<smem>>, %arg4: memref<8xf32, #tpu.memory_space<smem>>, %arg5: memref<1x1x2048xf32, #tpu.memory_space<vmem>>) attributes {dimension_semantics = [#tpu.dimension_semantics<parallel>, #tpu.dimension_semantics<parallel>], iteration_bounds = array<i64: 2, 1>, scalar_prefetch = 0 : i64, scratch_operands = 0 : i64, tpu.core_type = #tpu.core_type<tc>, window_params = [{transform_indices = @transform_0, window_bounds = array<i64: 1, 1, 1024>}, {transform_indices = @transform_1, window_bounds = array<i64: 8, 4>}, {transform_indices = @transform_2, window_bounds = array<i64: 8>}, {transform_indices = @transform_3, window_bounds = array<i64: 1, 1, 2048>}]} {
    %c0 = arith.constant 0 : index
    %0 = memref.load %arg4[%c0] : memref<8xf32, #tpu.memory_space<smem>>
    %c0_0 = arith.constant 0 : index
    %c0_1 = arith.constant 0 : index
    %1 = memref.load %arg3[%c0_0, %c0_1] : memref<8x4xf32, #tpu.memory_space<smem>>
    %c0_2 = arith.constant 0 : index
    %c0_3 = arith.constant 0 : index
    %c0_4 = arith.constant 0 : index
    %2 = vector.load %arg2[%c0_2, %c0_3, %c0_4] : memref<1x1x1024xf32, #tpu.memory_space<vmem>>, vector<1x1x256xf32>
    %3 = vector.shape_cast %2 : vector<1x1x256xf32> to vector<1x256xf32>
    %4 = vector.broadcast %1 : f32 to vector<1x256xf32>
    %5 = arith.mulf %4, %3 : vector<1x256xf32>
    %6 = vector.broadcast %0 : f32 to vector<1x256xf32>
    %7 = arith.addf %6, %5 : vector<1x256xf32>
    %c0_5 = arith.constant 0 : index
    %c1 = arith.constant 1 : index
    %8 = memref.load %arg3[%c0_5, %c1] : memref<8x4xf32, #tpu.memory_space<smem>>
    %c0_6 = arith.constant 0 : index
    %c0_7 = arith.constant 0 : index
    %c256 = arith.constant 256 : index
    %9 = vector.load %arg2[%c0_6, %c0_7, %c256] : memref<1x1x1024xf32, #tpu.memory_space<vmem>>, vector<1x1x256xf32>
    %10 = vector.shape_cast %9 : vector<1x1x256xf32> to vector<1x256xf32>
    %11 = vector.broadcast %8 : f32 to vector<1x256xf32>
    %12 = arith.mulf %11, %10 : vector<1x256xf32>
    %13 = arith.addf %7, %12 : vector<1x256xf32>
    %c0_8 = arith.constant 0 : index
    %c2 = arith.constant 2 : index
    %14 = memref.load %arg3[%c0_8, %c2] : memref<8x4xf32, #tpu.memory_space<smem>>
    %c0_9 = arith.constant 0 : index
    %c0_10 = arith.constant 0 : index
    %c512 = arith.constant 512 : index
    %15 = vector.load %arg2[%c0_9, %c0_10, %c512] : memref<1x1x1024xf32, #tpu.memory_space<vmem>>, vector<1x1x256xf32>
    %16 = vector.shape_cast %15 : vector<1x1x256xf32> to vector<1x256xf32>
    %17 = vector.broadcast %14 : f32 to vector<1x256xf32>
    %18 = arith.mulf %17, %16 : vector<1x256xf32>
    %19 = arith.addf %13, %18 : vector<1x256xf32>
    %c0_11 = arith.constant 0 : index
    %c3 = arith.constant 3 : index
    %20 = memref.load %arg3[%c0_11, %c3] : memref<8x4xf32, #tpu.memory_space<smem>>
    %c0_12 = arith.constant 0 : index
    %c0_13 = arith.constant 0 : index
    %c768 = arith.constant 768 : index
    %21 = vector.load %arg2[%c0_12, %c0_13, %c768] : memref<1x1x1024xf32, #tpu.memory_space<vmem>>, vector<1x1x256xf32>
    %22 = vector.shape_cast %21 : vector<1x1x256xf32> to vector<1x256xf32>
    %23 = vector.broadcast %20 : f32 to vector<1x256xf32>
    %24 = arith.mulf %23, %22 : vector<1x256xf32>
    %25 = arith.addf %19, %24 : vector<1x256xf32>
    %c0_14 = arith.constant 0 : index
    %c0_15 = arith.constant 0 : index
    %c0_16 = arith.constant 0 : index
    %26 = vector.load %arg5[%c0_14, %c0_15, %c0_16] : memref<1x1x2048xf32, #tpu.memory_space<vmem>>, vector<1x1x256xf32>
    %27 = vector.shape_cast %26 : vector<1x1x256xf32> to vector<1x256xf32>
    %28 = vector.shape_cast %25 : vector<1x256xf32> to vector<1x1x256xf32>
    tpu.vector_store %arg5[%c0_14, %c0_15, %c0_16], %28 {strides = array<i32>} : memref<1x1x2048xf32, #tpu.memory_space<vmem>>, vector<1x1x256xf32>,
    %c1_17 = arith.constant 1 : index
    %29 = memref.load %arg4[%c1_17] : memref<8xf32, #tpu.memory_space<smem>>
    %c1_18 = arith.constant 1 : index
    %c0_19 = arith.constant 0 : index
    %30 = memref.load %arg3[%c1_18, %c0_19] : memref<8x4xf32, #tpu.memory_space<smem>>
    %c0_20 = arith.constant 0 : index
    %c0_21 = arith.constant 0 : index
    %c0_22 = arith.constant 0 : index
    %31 = vector.load %arg2[%c0_20, %c0_21, %c0_22] : memref<1x1x1024xf32, #tpu.memory_space<vmem>>, vector<1x1x256xf32>
    %32 = vector.shape_cast %31 : vector<1x1x256xf32> to vector<1x256xf32>
    %33 = vector.broadcast %30 : f32 to vector<1x256xf32>
    %34 = arith.mulf %33, %32 : vector<1x256xf32>
    %35 = vector.broadcast %29 : f32 to vector<1x256xf32>
    %36 = arith.addf %35, %34 : vector<1x256xf32>
    %c1_23 = arith.constant 1 : index
    %c1_24 = arith.constant 1 : index
    %37 = memref.load %arg3[%c1_23, %c1_24] : memref<8x4xf32, #tpu.memory_space<smem>>
    %c0_25 = arith.constant 0 : index
    %c0_26 = arith.constant 0 : index
    %c256_27 = arith.constant 256 : index
    %38 = vector.load %arg2[%c0_25, %c0_26, %c256_27] : memref<1x1x1024xf32, #tpu.memory_space<vmem>>, vector<1x1x256xf32>
    %39 = vector.shape_cast %38 : vector<1x1x256xf32> to vector<1x256xf32>
    %40 = vector.broadcast %37 : f32 to vector<1x256xf32>
    %41 = arith.mulf %40, %39 : vector<1x256xf32>
    %42 = arith.addf %36, %41 : vector<1x256xf32>
    %c1_28 = arith.constant 1 : index
    %c2_29 = arith.constant 2 : index
    %43 = memref.load %arg3[%c1_28, %c2_29] : memref<8x4xf32, #tpu.memory_space<smem>>
    %c0_30 = arith.constant 0 : index
    %c0_31 = arith.constant 0 : index
    %c512_32 = arith.constant 512 : index
    %44 = vector.load %arg2[%c0_30, %c0_31, %c512_32] : memref<1x1x1024xf32, #tpu.memory_space<vmem>>, vector<1x1x256xf32>
    %45 = vector.shape_cast %44 : vector<1x1x256xf32> to vector<1x256xf32>
    %46 = vector.broadcast %43 : f32 to vector<1x256xf32>
    %47 = arith.mulf %46, %45 : vector<1x256xf32>
    %48 = arith.addf %42, %47 : vector<1x256xf32>
    %c1_33 = arith.constant 1 : index
    %c3_34 = arith.constant 3 : index
    %49 = memref.load %arg3[%c1_33, %c3_34] : memref<8x4xf32, #tpu.memory_space<smem>>
    %c0_35 = arith.constant 0 : index
    %c0_36 = arith.constant 0 : index
    %c768_37 = arith.constant 768 : index
    %50 = vector.load %arg2[%c0_35, %c0_36, %c768_37] : memref<1x1x1024xf32, #tpu.memory_space<vmem>>, vector<1x1x256xf32>
    %51 = vector.shape_cast %50 : vector<1x1x256xf32> to vector<1x256xf32>
    %52 = vector.broadcast %49 : f32 to vector<1x256xf32>
    %53 = arith.mulf %52, %51 : vector<1x256xf32>
    %54 = arith.addf %48, %53 : vector<1x256xf32>
    %c0_38 = arith.constant 0 : index
    %c0_39 = arith.constant 0 : index
    %c256_40 = arith.constant 256 : index
    %55 = vector.load %arg5[%c0_38, %c0_39, %c256_40] : memref<1x1x2048xf32, #tpu.memory_space<vmem>>, vector<1x1x256xf32>
    %56 = vector.shape_cast %55 : vector<1x1x256xf32> to vector<1x256xf32>
    %57 = vector.shape_cast %54 : vector<1x256xf32> to vector<1x1x256xf32>
    tpu.vector_store %arg5[%c0_38, %c0_39, %c256_40], %57 {strides = array<i32>} : memref<1x1x2048xf32, #tpu.memory_space<vmem>>, vector<1x1x256xf32>,
    %c2_41 = arith.constant 2 : index
    %58 = memref.load %arg4[%c2_41] : memref<8xf32, #tpu.memory_space<smem>>
    %c2_42 = arith.constant 2 : index
    %c0_43 = arith.constant 0 : index
    %59 = memref.load %arg3[%c2_42, %c0_43] : memref<8x4xf32, #tpu.memory_space<smem>>
    %c0_44 = arith.constant 0 : index
    %c0_45 = arith.constant 0 : index
    %c0_46 = arith.constant 0 : index
    %60 = vector.load %arg2[%c0_44, %c0_45, %c0_46] : memref<1x1x1024xf32, #tpu.memory_space<vmem>>, vector<1x1x256xf32>
    %61 = vector.shape_cast %60 : vector<1x1x256xf32> to vector<1x256xf32>
    %62 = vector.broadcast %59 : f32 to vector<1x256xf32>
    %63 = arith.mulf %62, %61 : vector<1x256xf32>
    %64 = vector.broadcast %58 : f32 to vector<1x256xf32>
    %65 = arith.addf %64, %63 : vector<1x256xf32>
    %c2_47 = arith.constant 2 : index
    %c1_48 = arith.constant 1 : index
    %66 = memref.load %arg3[%c2_47, %c1_48] : memref<8x4xf32, #tpu.memory_space<smem>>
    %c0_49 = arith.constant 0 : index
    %c0_50 = arith.constant 0 : index
    %c256_51 = arith.constant 256 : index
    %67 = vector.load %arg2[%c0_49, %c0_50, %c256_51] : memref<1x1x1024xf32, #tpu.memory_space<vmem>>, vector<1x1x256xf32>
    %68 = vector.shape_cast %67 : vector<1x1x256xf32> to vector<1x256xf32>
    %69 = vector.broadcast %66 : f32 to vector<1x256xf32>
    %70 = arith.mulf %69, %68 : vector<1x256xf32>
    %71 = arith.addf %65, %70 : vector<1x256xf32>
    %c2_52 = arith.constant 2 : index
    %c2_53 = arith.constant 2 : index
    %72 = memref.load %arg3[%c2_52, %c2_53] : memref<8x4xf32, #tpu.memory_space<smem>>
    %c0_54 = arith.constant 0 : index
    %c0_55 = arith.constant 0 : index
    %c512_56 = arith.constant 512 : index
    %73 = vector.load %arg2[%c0_54, %c0_55, %c512_56] : memref<1x1x1024xf32, #tpu.memory_space<vmem>>, vector<1x1x256xf32>
    %74 = vector.shape_cast %73 : vector<1x1x256xf32> to vector<1x256xf32>
    %75 = vector.broadcast %72 : f32 to vector<1x256xf32>
    %76 = arith.mulf %75, %74 : vector<1x256xf32>
    %77 = arith.addf %71, %76 : vector<1x256xf32>
    %c2_57 = arith.constant 2 : index
    %c3_58 = arith.constant 3 : index
    %78 = memref.load %arg3[%c2_57, %c3_58] : memref<8x4xf32, #tpu.memory_space<smem>>
    %c0_59 = arith.constant 0 : index
    %c0_60 = arith.constant 0 : index
    %c768_61 = arith.constant 768 : index
    %79 = vector.load %arg2[%c0_59, %c0_60, %c768_61] : memref<1x1x1024xf32, #tpu.memory_space<vmem>>, vector<1x1x256xf32>
    %80 = vector.shape_cast %79 : vector<1x1x256xf32> to vector<1x256xf32>
    %81 = vector.broadcast %78 : f32 to vector<1x256xf32>
    %82 = arith.mulf %81, %80 : vector<1x256xf32>
    %83 = arith.addf %77, %82 : vector<1x256xf32>
    %c0_62 = arith.constant 0 : index
    %c0_63 = arith.constant 0 : index
    %c512_64 = arith.constant 512 : index
    %84 = vector.load %arg5[%c0_62, %c0_63, %c512_64] : memref<1x1x2048xf32, #tpu.memory_space<vmem>>, vector<1x1x256xf32>
    %85 = vector.shape_cast %84 : vector<1x1x256xf32> to vector<1x256xf32>
    %86 = vector.shape_cast %83 : vector<1x256xf32> to vector<1x1x256xf32>
    tpu.vector_store %arg5[%c0_62, %c0_63, %c512_64], %86 {strides = array<i32>} : memref<1x1x2048xf32, #tpu.memory_space<vmem>>, vector<1x1x256xf32>,
    %c3_65 = arith.constant 3 : index
    %87 = memref.load %arg4[%c3_65] : memref<8xf32, #tpu.memory_space<smem>>
    %c3_66 = arith.constant 3 : index
    %c0_67 = arith.constant 0 : index
    %88 = memref.load %arg3[%c3_66, %c0_67] : memref<8x4xf32, #tpu.memory_space<smem>>
    %c0_68 = arith.constant 0 : index
    %c0_69 = arith.constant 0 : index
    %c0_70 = arith.constant 0 : index
    %89 = vector.load %arg2[%c0_68, %c0_69, %c0_70] : memref<1x1x1024xf32, #tpu.memory_space<vmem>>, vector<1x1x256xf32>
    %90 = vector.shape_cast %89 : vector<1x1x256xf32> to vector<1x256xf32>
    %91 = vector.broadcast %88 : f32 to vector<1x256xf32>
    %92 = arith.mulf %91, %90 : vector<1x256xf32>
    %93 = vector.broadcast %87 : f32 to vector<1x256xf32>
    %94 = arith.addf %93, %92 : vector<1x256xf32>
    %c3_71 = arith.constant 3 : index
    %c1_72 = arith.constant 1 : index
    %95 = memref.load %arg3[%c3_71, %c1_72] : memref<8x4xf32, #tpu.memory_space<smem>>
    %c0_73 = arith.constant 0 : index
    %c0_74 = arith.constant 0 : index
    %c256_75 = arith.constant 256 : index
    %96 = vector.load %arg2[%c0_73, %c0_74, %c256_75] : memref<1x1x1024xf32, #tpu.memory_space<vmem>>, vector<1x1x256xf32>
    %97 = vector.shape_cast %96 : vector<1x1x256xf32> to vector<1x256xf32>
    %98 = vector.broadcast %95 : f32 to vector<1x256xf32>
    %99 = arith.mulf %98, %97 : vector<1x256xf32>
    %100 = arith.addf %94, %99 : vector<1x256xf32>
    %c3_76 = arith.constant 3 : index
    %c2_77 = arith.constant 2 : index
    %101 = memref.load %arg3[%c3_76, %c2_77] : memref<8x4xf32, #tpu.memory_space<smem>>
    %c0_78 = arith.constant 0 : index
    %c0_79 = arith.constant 0 : index
    %c512_80 = arith.constant 512 : index
    %102 = vector.load %arg2[%c0_78, %c0_79, %c512_80] : memref<1x1x1024xf32, #tpu.memory_space<vmem>>, vector<1x1x256xf32>
    %103 = vector.shape_cast %102 : vector<1x1x256xf32> to vector<1x256xf32>
    %104 = vector.broadcast %101 : f32 to vector<1x256xf32>
    %105 = arith.mulf %104, %103 : vector<1x256xf32>
    %106 = arith.addf %100, %105 : vector<1x256xf32>
    %c3_81 = arith.constant 3 : index
    %c3_82 = arith.constant 3 : index
    %107 = memref.load %arg3[%c3_81, %c3_82] : memref<8x4xf32, #tpu.memory_space<smem>>
    %c0_83 = arith.constant 0 : index
    %c0_84 = arith.constant 0 : index
    %c768_85 = arith.constant 768 : index
    %108 = vector.load %arg2[%c0_83, %c0_84, %c768_85] : memref<1x1x1024xf32, #tpu.memory_space<vmem>>, vector<1x1x256xf32>
    %109 = vector.shape_cast %108 : vector<1x1x256xf32> to vector<1x256xf32>
    %110 = vector.broadcast %107 : f32 to vector<1x256xf32>
    %111 = arith.mulf %110, %109 : vector<1x256xf32>
    %112 = arith.addf %106, %111 : vector<1x256xf32>
    %c0_86 = arith.constant 0 : index
    %c0_87 = arith.constant 0 : index
    %c768_88 = arith.constant 768 : index
    %113 = vector.load %arg5[%c0_86, %c0_87, %c768_88] : memref<1x1x2048xf32, #tpu.memory_space<vmem>>, vector<1x1x256xf32>
    %114 = vector.shape_cast %113 : vector<1x1x256xf32> to vector<1x256xf32>
    %115 = vector.shape_cast %112 : vector<1x256xf32> to vector<1x1x256xf32>
    tpu.vector_store %arg5[%c0_86, %c0_87, %c768_88], %115 {strides = array<i32>} : memref<1x1x2048xf32, #tpu.memory_space<vmem>>, vector<1x1x256xf32>,
    %c4 = arith.constant 4 : index
    %116 = memref.load %arg4[%c4] : memref<8xf32, #tpu.memory_space<smem>>
    %c4_89 = arith.constant 4 : index
    %c0_90 = arith.constant 0 : index
    %117 = memref.load %arg3[%c4_89, %c0_90] : memref<8x4xf32, #tpu.memory_space<smem>>
    %c0_91 = arith.constant 0 : index
    %c0_92 = arith.constant 0 : index
    %c0_93 = arith.constant 0 : index
    %118 = vector.load %arg2[%c0_91, %c0_92, %c0_93] : memref<1x1x1024xf32, #tpu.memory_space<vmem>>, vector<1x1x256xf32>
    %119 = vector.shape_cast %118 : vector<1x1x256xf32> to vector<1x256xf32>
    %120 = vector.broadcast %117 : f32 to vector<1x256xf32>
    %121 = arith.mulf %120, %119 : vector<1x256xf32>
    %122 = vector.broadcast %116 : f32 to vector<1x256xf32>
    %123 = arith.addf %122, %121 : vector<1x256xf32>
    %c4_94 = arith.constant 4 : index
    %c1_95 = arith.constant 1 : index
    %124 = memref.load %arg3[%c4_94, %c1_95] : memref<8x4xf32, #tpu.memory_space<smem>>
    %c0_96 = arith.constant 0 : index
    %c0_97 = arith.constant 0 : index
    %c256_98 = arith.constant 256 : index
    %125 = vector.load %arg2[%c0_96, %c0_97, %c256_98] : memref<1x1x1024xf32, #tpu.memory_space<vmem>>, vector<1x1x256xf32>
    %126 = vector.shape_cast %125 : vector<1x1x256xf32> to vector<1x256xf32>
    %127 = vector.broadcast %124 : f32 to vector<1x256xf32>
    %128 = arith.mulf %127, %126 : vector<1x256xf32>
    %129 = arith.addf %123, %128 : vector<1x256xf32>
    %c4_99 = arith.constant 4 : index
    %c2_100 = arith.constant 2 : index
    %130 = memref.load %arg3[%c4_99, %c2_100] : memref<8x4xf32, #tpu.memory_space<smem>>
    %c0_101 = arith.constant 0 : index
    %c0_102 = arith.constant 0 : index
    %c512_103 = arith.constant 512 : index
    %131 = vector.load %arg2[%c0_101, %c0_102, %c512_103] : memref<1x1x1024xf32, #tpu.memory_space<vmem>>, vector<1x1x256xf32>
    %132 = vector.shape_cast %131 : vector<1x1x256xf32> to vector<1x256xf32>
    %133 = vector.broadcast %130 : f32 to vector<1x256xf32>
    %134 = arith.mulf %133, %132 : vector<1x256xf32>
    %135 = arith.addf %129, %134 : vector<1x256xf32>
    %c4_104 = arith.constant 4 : index
    %c3_105 = arith.constant 3 : index
    %136 = memref.load %arg3[%c4_104, %c3_105] : memref<8x4xf32, #tpu.memory_space<smem>>
    %c0_106 = arith.constant 0 : index
    %c0_107 = arith.constant 0 : index
    %c768_108 = arith.constant 768 : index
    %137 = vector.load %arg2[%c0_106, %c0_107, %c768_108] : memref<1x1x1024xf32, #tpu.memory_space<vmem>>, vector<1x1x256xf32>
    %138 = vector.shape_cast %137 : vector<1x1x256xf32> to vector<1x256xf32>
    %139 = vector.broadcast %136 : f32 to vector<1x256xf32>
    %140 = arith.mulf %139, %138 : vector<1x256xf32>
    %141 = arith.addf %135, %140 : vector<1x256xf32>
    %c0_109 = arith.constant 0 : index
    %c0_110 = arith.constant 0 : index
    %c1024 = arith.constant 1024 : index
    %142 = vector.load %arg5[%c0_109, %c0_110, %c1024] : memref<1x1x2048xf32, #tpu.memory_space<vmem>>, vector<1x1x256xf32>
    %143 = vector.shape_cast %142 : vector<1x1x256xf32> to vector<1x256xf32>
    %144 = vector.shape_cast %141 : vector<1x256xf32> to vector<1x1x256xf32>
    tpu.vector_store %arg5[%c0_109, %c0_110, %c1024], %144 {strides = array<i32>} : memref<1x1x2048xf32, #tpu.memory_space<vmem>>, vector<1x1x256xf32>,
    %c5 = arith.constant 5 : index
    %145 = memref.load %arg4[%c5] : memref<8xf32, #tpu.memory_space<smem>>
    %c5_111 = arith.constant 5 : index
    %c0_112 = arith.constant 0 : index
    %146 = memref.load %arg3[%c5_111, %c0_112] : memref<8x4xf32, #tpu.memory_space<smem>>
    %c0_113 = arith.constant 0 : index
    %c0_114 = arith.constant 0 : index
    %c0_115 = arith.constant 0 : index
    %147 = vector.load %arg2[%c0_113, %c0_114, %c0_115] : memref<1x1x1024xf32, #tpu.memory_space<vmem>>, vector<1x1x256xf32>
    %148 = vector.shape_cast %147 : vector<1x1x256xf32> to vector<1x256xf32>
    %149 = vector.broadcast %146 : f32 to vector<1x256xf32>
    %150 = arith.mulf %149, %148 : vector<1x256xf32>
    %151 = vector.broadcast %145 : f32 to vector<1x256xf32>
    %152 = arith.addf %151, %150 : vector<1x256xf32>
    %c5_116 = arith.constant 5 : index
    %c1_117 = arith.constant 1 : index
    %153 = memref.load %arg3[%c5_116, %c1_117] : memref<8x4xf32, #tpu.memory_space<smem>>
    %c0_118 = arith.constant 0 : index
    %c0_119 = arith.constant 0 : index
    %c256_120 = arith.constant 256 : index
    %154 = vector.load %arg2[%c0_118, %c0_119, %c256_120] : memref<1x1x1024xf32, #tpu.memory_space<vmem>>, vector<1x1x256xf32>
    %155 = vector.shape_cast %154 : vector<1x1x256xf32> to vector<1x256xf32>
    %156 = vector.broadcast %153 : f32 to vector<1x256xf32>
    %157 = arith.mulf %156, %155 : vector<1x256xf32>
    %158 = arith.addf %152, %157 : vector<1x256xf32>
    %c5_121 = arith.constant 5 : index
    %c2_122 = arith.constant 2 : index
    %159 = memref.load %arg3[%c5_121, %c2_122] : memref<8x4xf32, #tpu.memory_space<smem>>
    %c0_123 = arith.constant 0 : index
    %c0_124 = arith.constant 0 : index
    %c512_125 = arith.constant 512 : index
    %160 = vector.load %arg2[%c0_123, %c0_124, %c512_125] : memref<1x1x1024xf32, #tpu.memory_space<vmem>>, vector<1x1x256xf32>
    %161 = vector.shape_cast %160 : vector<1x1x256xf32> to vector<1x256xf32>
    %162 = vector.broadcast %159 : f32 to vector<1x256xf32>
    %163 = arith.mulf %162, %161 : vector<1x256xf32>
    %164 = arith.addf %158, %163 : vector<1x256xf32>
    %c5_126 = arith.constant 5 : index
    %c3_127 = arith.constant 3 : index
    %165 = memref.load %arg3[%c5_126, %c3_127] : memref<8x4xf32, #tpu.memory_space<smem>>
    %c0_128 = arith.constant 0 : index
    %c0_129 = arith.constant 0 : index
    %c768_130 = arith.constant 768 : index
    %166 = vector.load %arg2[%c0_128, %c0_129, %c768_130] : memref<1x1x1024xf32, #tpu.memory_space<vmem>>, vector<1x1x256xf32>
    %167 = vector.shape_cast %166 : vector<1x1x256xf32> to vector<1x256xf32>
    %168 = vector.broadcast %165 : f32 to vector<1x256xf32>
    %169 = arith.mulf %168, %167 : vector<1x256xf32>
    %170 = arith.addf %164, %169 : vector<1x256xf32>
    %c0_131 = arith.constant 0 : index
    %c0_132 = arith.constant 0 : index
    %c1280 = arith.constant 1280 : index
    %171 = vector.load %arg5[%c0_131, %c0_132, %c1280] : memref<1x1x2048xf32, #tpu.memory_space<vmem>>, vector<1x1x256xf32>
    %172 = vector.shape_cast %171 : vector<1x1x256xf32> to vector<1x256xf32>
    %173 = vector.shape_cast %170 : vector<1x256xf32> to vector<1x1x256xf32>
    tpu.vector_store %arg5[%c0_131, %c0_132, %c1280], %173 {strides = array<i32>} : memref<1x1x2048xf32, #tpu.memory_space<vmem>>, vector<1x1x256xf32>,
    %c6 = arith.constant 6 : index
    %174 = memref.load %arg4[%c6] : memref<8xf32, #tpu.memory_space<smem>>
    %c6_133 = arith.constant 6 : index
    %c0_134 = arith.constant 0 : index
    %175 = memref.load %arg3[%c6_133, %c0_134] : memref<8x4xf32, #tpu.memory_space<smem>>
    %c0_135 = arith.constant 0 : index
    %c0_136 = arith.constant 0 : index
    %c0_137 = arith.constant 0 : index
    %176 = vector.load %arg2[%c0_135, %c0_136, %c0_137] : memref<1x1x1024xf32, #tpu.memory_space<vmem>>, vector<1x1x256xf32>
    %177 = vector.shape_cast %176 : vector<1x1x256xf32> to vector<1x256xf32>
    %178 = vector.broadcast %175 : f32 to vector<1x256xf32>
    %179 = arith.mulf %178, %177 : vector<1x256xf32>
    %180 = vector.broadcast %174 : f32 to vector<1x256xf32>
    %181 = arith.addf %180, %179 : vector<1x256xf32>
    %c6_138 = arith.constant 6 : index
    %c1_139 = arith.constant 1 : index
    %182 = memref.load %arg3[%c6_138, %c1_139] : memref<8x4xf32, #tpu.memory_space<smem>>
    %c0_140 = arith.constant 0 : index
    %c0_141 = arith.constant 0 : index
    %c256_142 = arith.constant 256 : index
    %183 = vector.load %arg2[%c0_140, %c0_141, %c256_142] : memref<1x1x1024xf32, #tpu.memory_space<vmem>>, vector<1x1x256xf32>
    %184 = vector.shape_cast %183 : vector<1x1x256xf32> to vector<1x256xf32>
    %185 = vector.broadcast %182 : f32 to vector<1x256xf32>
    %186 = arith.mulf %185, %184 : vector<1x256xf32>
    %187 = arith.addf %181, %186 : vector<1x256xf32>
    %c6_143 = arith.constant 6 : index
    %c2_144 = arith.constant 2 : index
    %188 = memref.load %arg3[%c6_143, %c2_144] : memref<8x4xf32, #tpu.memory_space<smem>>
    %c0_145 = arith.constant 0 : index
    %c0_146 = arith.constant 0 : index
    %c512_147 = arith.constant 512 : index
    %189 = vector.load %arg2[%c0_145, %c0_146, %c512_147] : memref<1x1x1024xf32, #tpu.memory_space<vmem>>, vector<1x1x256xf32>
    %190 = vector.shape_cast %189 : vector<1x1x256xf32> to vector<1x256xf32>
    %191 = vector.broadcast %188 : f32 to vector<1x256xf32>
    %192 = arith.mulf %191, %190 : vector<1x256xf32>
    %193 = arith.addf %187, %192 : vector<1x256xf32>
    %c6_148 = arith.constant 6 : index
    %c3_149 = arith.constant 3 : index
    %194 = memref.load %arg3[%c6_148, %c3_149] : memref<8x4xf32, #tpu.memory_space<smem>>
    %c0_150 = arith.constant 0 : index
    %c0_151 = arith.constant 0 : index
    %c768_152 = arith.constant 768 : index
    %195 = vector.load %arg2[%c0_150, %c0_151, %c768_152] : memref<1x1x1024xf32, #tpu.memory_space<vmem>>, vector<1x1x256xf32>
    %196 = vector.shape_cast %195 : vector<1x1x256xf32> to vector<1x256xf32>
    %197 = vector.broadcast %194 : f32 to vector<1x256xf32>
    %198 = arith.mulf %197, %196 : vector<1x256xf32>
    %199 = arith.addf %193, %198 : vector<1x256xf32>
    %c0_153 = arith.constant 0 : index
    %c0_154 = arith.constant 0 : index
    %c1536 = arith.constant 1536 : index
    %200 = vector.load %arg5[%c0_153, %c0_154, %c1536] : memref<1x1x2048xf32, #tpu.memory_space<vmem>>, vector<1x1x256xf32>
    %201 = vector.shape_cast %200 : vector<1x1x256xf32> to vector<1x256xf32>
    %202 = vector.shape_cast %199 : vector<1x256xf32> to vector<1x1x256xf32>
    tpu.vector_store %arg5[%c0_153, %c0_154, %c1536], %202 {strides = array<i32>} : memref<1x1x2048xf32, #tpu.memory_space<vmem>>, vector<1x1x256xf32>,
    %c7 = arith.constant 7 : index
    %203 = memref.load %arg4[%c7] : memref<8xf32, #tpu.memory_space<smem>>
    %c7_155 = arith.constant 7 : index
    %c0_156 = arith.constant 0 : index
    %204 = memref.load %arg3[%c7_155, %c0_156] : memref<8x4xf32, #tpu.memory_space<smem>>
    %c0_157 = arith.constant 0 : index
    %c0_158 = arith.constant 0 : index
    %c0_159 = arith.constant 0 : index
    %205 = vector.load %arg2[%c0_157, %c0_158, %c0_159] : memref<1x1x1024xf32, #tpu.memory_space<vmem>>, vector<1x1x256xf32>
    %206 = vector.shape_cast %205 : vector<1x1x256xf32> to vector<1x256xf32>
    %207 = vector.broadcast %204 : f32 to vector<1x256xf32>
    %208 = arith.mulf %207, %206 : vector<1x256xf32>
    %209 = vector.broadcast %203 : f32 to vector<1x256xf32>
    %210 = arith.addf %209, %208 : vector<1x256xf32>
    %c7_160 = arith.constant 7 : index
    %c1_161 = arith.constant 1 : index
    %211 = memref.load %arg3[%c7_160, %c1_161] : memref<8x4xf32, #tpu.memory_space<smem>>
    %c0_162 = arith.constant 0 : index
    %c0_163 = arith.constant 0 : index
    %c256_164 = arith.constant 256 : index
    %212 = vector.load %arg2[%c0_162, %c0_163, %c256_164] : memref<1x1x1024xf32, #tpu.memory_space<vmem>>, vector<1x1x256xf32>
    %213 = vector.shape_cast %212 : vector<1x1x256xf32> to vector<1x256xf32>
    %214 = vector.broadcast %211 : f32 to vector<1x256xf32>
    %215 = arith.mulf %214, %213 : vector<1x256xf32>
    %216 = arith.addf %210, %215 : vector<1x256xf32>
    %c7_165 = arith.constant 7 : index
    %c2_166 = arith.constant 2 : index
    %217 = memref.load %arg3[%c7_165, %c2_166] : memref<8x4xf32, #tpu.memory_space<smem>>
    %c0_167 = arith.constant 0 : index
    %c0_168 = arith.constant 0 : index
    %c512_169 = arith.constant 512 : index
    %218 = vector.load %arg2[%c0_167, %c0_168, %c512_169] : memref<1x1x1024xf32, #tpu.memory_space<vmem>>, vector<1x1x256xf32>
    %219 = vector.shape_cast %218 : vector<1x1x256xf32> to vector<1x256xf32>
    %220 = vector.broadcast %217 : f32 to vector<1x256xf32>
    %221 = arith.mulf %220, %219 : vector<1x256xf32>
    %222 = arith.addf %216, %221 : vector<1x256xf32>
    %c7_170 = arith.constant 7 : index
    %c3_171 = arith.constant 3 : index
    %223 = memref.load %arg3[%c7_170, %c3_171] : memref<8x4xf32, #tpu.memory_space<smem>>
    %c0_172 = arith.constant 0 : index
    %c0_173 = arith.constant 0 : index
    %c768_174 = arith.constant 768 : index
    %224 = vector.load %arg2[%c0_172, %c0_173, %c768_174] : memref<1x1x1024xf32, #tpu.memory_space<vmem>>, vector<1x1x256xf32>
    %225 = vector.shape_cast %224 : vector<1x1x256xf32> to vector<1x256xf32>
    %226 = vector.broadcast %223 : f32 to vector<1x256xf32>
    %227 = arith.mulf %226, %225 : vector<1x256xf32>
    %228 = arith.addf %222, %227 : vector<1x256xf32>
    %c0_175 = arith.constant 0 : index
    %c0_176 = arith.constant 0 : index
    %c1792 = arith.constant 1792 : index
    %229 = vector.load %arg5[%c0_175, %c0_176, %c1792] : memref<1x1x2048xf32, #tpu.memory_space<vmem>>, vector<1x1x256xf32>
    %230 = vector.shape_cast %229 : vector<1x1x256xf32> to vector<1x256xf32>
    %231 = vector.shape_cast %228 : vector<1x256xf32> to vector<1x1x256xf32>
    tpu.vector_store %arg5[%c0_175, %c0_176, %c1792], %231 {strides = array<i32>} : memref<1x1x2048xf32, #tpu.memory_space<vmem>>, vector<1x1x256xf32>,
    return
  }
  func.func @transform_0(%arg0: i32, %arg1: i32) -> (i32, i32, i32) {
    %c0_i32 = arith.constant 0 : i32
    %c0_i32_0 = arith.constant 0 : i32
    return %arg0, %arg1, %c0_i32 : i32, i32, i32
  }
  func.func @transform_1(%arg0: i32, %arg1: i32) -> (i32, i32) {
    %c0_i32 = arith.constant 0 : i32
    %c0_i32_0 = arith.constant 0 : i32
    %c0_i32_1 = arith.constant 0 : i32
    return %c0_i32, %c0_i32_0 : i32, i32
  }
  func.func @transform_2(%arg0: i32, %arg1: i32) -> i32 {
    %c0_i32 = arith.constant 0 : i32
    %c0_i32_0 = arith.constant 0 : i32
    return %c0_i32 : i32
  }
  func.func @transform_3(%arg0: i32, %arg1: i32) -> (i32, i32, i32) {
    %c0_i32 = arith.constant 0 : i32
    %c0_i32_0 = arith.constant 0 : i32
    return %arg0, %arg1, %c0_i32 : i32, i32, i32
  }
}

</mosaic_0001>

<llo_original>
// kernel: tpu_custom_call.1
$region0: #{tpu_custom_call.1}
  #allocation0 [shape = 'u32[]', space=smem, size = 0x4, offset = 0x4, fixed_abs, tag = 'smem constant byte address 0x4 - core index']
  #allocation1 [shape = 'u32[144,128]{1,0:T(1,128)}', space=vmem, size = 0x12000, scoped, tag = 'internal scratch']
  %s0 = inlined_call_operand.hbm [shape: f32[2,1,1024], index: 0, kind: input, shape index: {}]
  %s1 = inlined_call_operand.vmem [shape: f32[8,4], index: 1, kind: input, shape index: {}]
  %s2 = inlined_call_operand.vmem [shape: f32[8], index: 2, kind: input, shape index: {}]
  %s3 = inlined_call_operand.hbm [shape: f32[2,1,2048], index: 3, kind: output, shape index: {}]
  %s4 = sld [smem:[#allocation0]]
  $region57: #{tpu_custom_call.1} parent=0
    _
  %s6 = ssub.s32 1, %s4
  %s7 = scalar_select 0, %s6, %s4
  $region1: #{tpu_custom_call.1} parent=0
    #allocation2 [shape = 'u8[8192]{0}', space=vmem, size = 0x2000, scoped, tag = 'input window, operand 0']
    #allocation3 [shape = 's32[2]{0}', space=sflag, size = 0x8, scoped, tag = 'scoped memory for tpu_custom_call.1']
    #allocation4 [shape = 's32[2]{0}', space=sflag, size = 0x8, scoped, tag = 'scoped memory for tpu_custom_call.1']
    #allocation5 [shape = 's32[2]{0}', space=sflag, size = 0x8, scoped, tag = 'scoped memory for tpu_custom_call.1']
    #allocation6 [shape = 'u8[4096]{0}', space=smem, size = 0x1000, scoped, tag = 'input window, operand 1, single buffered']
    #allocation7 [shape = 'u8[512]{0}', space=smem, size = 0x200, scoped, tag = 'input window, operand 2, single buffered']
    #allocation8 [shape = 's32[1]{0}', space=sflag, size = 0x4, scoped, tag = 'scoped memory for tpu_custom_call.1']
    #allocation9 [shape = 'u8[16384]{0}', space=vmem, size = 0x4000, scoped, tag = 'output window, operand 0']
    %8 = vsyncpa [#allocation3], 0
    %s9 = scalar_lea.sflag [#allocation3], 1
    %10 = vsyncpa %s9, 0
    %11 = vsyncpa [#allocation5], 0
    %12 = vsyncpa [#allocation8], 0
    %13 = vsyncpa [#allocation4], 0
    %s14 = scalar_lea.sflag [#allocation4], 1
    %15 = vsyncpa %s14, 0
    loop: start=0, step=1, limit=4
    $region2: #{tpu_custom_call.1} parent=1 // loop_pre_header
      _
    $region3: #{tpu_custom_call.1} parent=1 // loop_header
      %s17 = sphi 0, %s21
      %p18 = scmp.ge.s32.totalorder %s17, 4
      %s24 = sphi 0, %s36
      %s25 = sphi 0, %s32
      %s26 = sphi 0, %s24
      %s27 = sphi 0, %s25
      %s28 = sphi 0, %s26
      %s29 = sphi 0, %s27
      %s41 = sphi 0, %s43
      %s44 = sphi 0, %s41
      %s45 = sphi 0, %s44
      %s61 = sphi 0, %s45
      %s65 = sphi 0, %s65
      %s67 = sphi 0, %s65
      %s68 = sphi 0, %s67
      %s82 = sphi 0, %s68
      %s86 = sphi 0, %s86
      %s88 = sphi 0, %s86
      %s89 = sphi 0, %s88
      %s103 = sphi 0, %s89
      %s111 = sphi 0, %s113
      %s114 = sphi 0, %s111
      %s115 = sphi 0, %s114
      %s131 = sphi 0, %s115
    $region4: #{tpu_custom_call.1} parent=1 // loop_header_branch
      %20 = sbr.rel (%p18) target = $region8
    $region5: #{tpu_custom_call.1} parent=1 // loop_body
      %s22 = ssub.s32 %s17, 1
      %s23 = ssub.s32 %s17, 2
      %s30 = sadd.s32 1, %s25
      %p31 = scmp.ge.s32.totalorder %s30, 1
      %s32 = scalar_select %p31, 0, %s30
      %s33 = sadd.s32 1, %s24
      %s34 = scalar_select %p31, %s33, %s24
      %p35 = scmp.ge.s32.totalorder %s34, 2
      %s36 = scalar_select %p35, 0, %s34
      %s37 = ssub.s32 %s24, %s36
      %s38 = ssub.s32 %s25, %s32
      %s39 = sor.u32 %s37, %s38
      %p40 = scmp.eq.s32.totalorder %s39, 0
      %s42 = sadd.s32 %s41, 1
      %s43 = scalar_select %p40, %s41, %s42
      %p46 = pneg %p40
      %p47 = scmp.eq.s32.totalorder %s17, 1
      %p48 = por %p46, %p47
      %p49 = scmp.ne.s32.totalorder %s41, %s44
      %p50 = scmp.eq.s32.totalorder %s17, 0
      %p51 = por %p49, %p50
      %p52 = scmp.ne.s32.totalorder %s41, %s44
      %p53 = scmp.eq.s32.totalorder %s22, 1
      %p54 = por %p52, %p53
      %p55 = scmp.ne.s32.totalorder %s44, %s45
      %p56 = scmp.eq.s32.totalorder %s22, 0
      %p57 = por %p55, %p56
      %p58 = scmp.ne.s32.totalorder %s44, %s45
      %p59 = scmp.eq.s32.totalorder %s23, 1
      %p60 = por %p58, %p59
      %p62 = scmp.ne.s32.totalorder %s45, %s61
      %p63 = scmp.eq.s32.totalorder %s23, 0
      %p64 = por %p62, %p63
      %s66 = sadd.s32 %s65, 1
      %p69 = scmp.eq.s32.totalorder %s17, 1
      %p70 = scmp.ne.s32.totalorder %s65, %s67
      %p71 = scmp.eq.s32.totalorder %s17, 0
      %p72 = por %p70, %p71
      %p73 = scmp.ne.s32.totalorder %s65, %s67
      %p74 = scmp.eq.s32.totalorder %s22, 1
      %p75 = por %p73, %p74
      %p76 = scmp.ne.s32.totalorder %s67, %s68
      %p77 = scmp.eq.s32.totalorder %s22, 0
      %p78 = por %p76, %p77
      %p79 = scmp.ne.s32.totalorder %s67, %s68
      %p80 = scmp.eq.s32.totalorder %s23, 1
      %p81 = por %p79, %p80
      %p83 = scmp.ne.s32.totalorder %s68, %s82
      %p84 = scmp.eq.s32.totalorder %s23, 0
      %p85 = por %p83, %p84
      %s87 = sadd.s32 %s86, 1
      %p90 = scmp.eq.s32.totalorder %s17, 1
      %p91 = scmp.ne.s32.totalorder %s86, %s88
      %p92 = scmp.eq.s32.totalorder %s17, 0
      %p93 = por %p91, %p92
      %p94 = scmp.ne.s32.totalorder %s86, %s88
      %p95 = scmp.eq.s32.totalorder %s22, 1
      %p96 = por %p94, %p95
      %p97 = scmp.ne.s32.totalorder %s88, %s89
      %p98 = scmp.eq.s32.totalorder %s22, 0
      %p99 = por %p97, %p98
      %p100 = scmp.ne.s32.totalorder %s88, %s89
      %p101 = scmp.eq.s32.totalorder %s23, 1
      %p102 = por %p100, %p101
      %p104 = scmp.ne.s32.totalorder %s89, %s103
      %p105 = scmp.eq.s32.totalorder %s23, 0
      %p106 = por %p104, %p105
      %s107 = ssub.s32 %s24, %s36
      %s108 = ssub.s32 %s25, %s32
      %s109 = sor.u32 %s107, %s108
      %p110 = scmp.eq.s32.totalorder %s109, 0
      %s112 = sadd.s32 %s111, 1
      %s113 = scalar_select %p110, %s111, %s112
      %p116 = pneg %p110
      %p117 = scmp.eq.s32.totalorder %s17, 1
      %p118 = por %p116, %p117
      %p119 = scmp.ne.s32.totalorder %s111, %s114
      %p120 = scmp.eq.s32.totalorder %s17, 0
      %p121 = por %p119, %p120
      %p122 = scmp.ne.s32.totalorder %s111, %s114
      %p123 = scmp.eq.s32.totalorder %s22, 1
      %p124 = por %p122, %p123
      %p125 = scmp.ne.s32.totalorder %s114, %s115
      %p126 = scmp.eq.s32.totalorder %s22, 0
      %p127 = por %p125, %p126
      %p128 = scmp.ne.s32.totalorder %s114, %s115
      %p129 = scmp.eq.s32.totalorder %s23, 1
      %p130 = por %p128, %p129
      %p132 = scmp.ne.s32.totalorder %s115, %s131
      %p133 = scmp.eq.s32.totalorder %s23, 0
      %p134 = por %p132, %p133
      %p135 = scmp.le.s32.totalorder 1, %s17
      %p136 = scmp.lt.s32.totalorder %s17, 3
      %p137 = pnand %p135, %p136
      %p138 = pneg %p137
      // Predicated region
      $region9: #{tpu_custom_call.1} parent=5 // pred_check
        _
      $region10: #{tpu_custom_call.1} parent=5 // pred_check_branch
        %140 = sbr.rel (%p137) target = $region12
      $region11: #{tpu_custom_call.1} parent=5 // pred_region
        %s141 = ssub.s32 %s17, 1
        // Predicated region
        $region13: #{tpu_custom_call.1} parent=11 // pred_check
          %p142 = pneg %p78
        $region14: #{tpu_custom_call.1} parent=11 // pred_check_branch
          %144 = sbr.rel (%p142) target = $region16
        $region15: #{tpu_custom_call.1} parent=11 // pred_region
          %s146 = ssub.s32 128, 128
          %147 = vsyncadd [#allocation5], %s146
          %s149 = sshll.u32 %s1, 4
          %s150 = int_to_ptr.vmem [resolvable:$true] %s149
          %152 = dma.vmem_to_smem %s150, 128, [#allocation6], [#allocation5]
        $region16: #{tpu_custom_call.1} parent=11 // pred_fallthru
          _
        // Predicated region
        $region17: #{tpu_custom_call.1} parent=11 // pred_check
          %p153 = pneg %p99
        $region18: #{tpu_custom_call.1} parent=11 // pred_check_branch
          %155 = sbr.rel (%p153) target = $region20
        $region19: #{tpu_custom_call.1} parent=11 // pred_region
          %s157 = ssub.s32 16, 16
          %158 = vsyncadd [#allocation8], %s157
          %s160 = sshll.u32 %s2, 4
          %s161 = int_to_ptr.vmem [resolvable:$true] %s160
          %163 = dma.vmem_to_smem %s161, 16, [#allocation7], [#allocation8]
        $region20: #{tpu_custom_call.1} parent=11 // pred_fallthru
          _
      $region12: #{tpu_custom_call.1} parent=5 // pred_fallthru
        _
      %p164 = scmp.lt.s32.totalorder %s17, 2
      // Predicated region
      $region21: #{tpu_custom_call.1} parent=5 // pred_check
        %p165 = pneg %p164
      $region22: #{tpu_custom_call.1} parent=5 // pred_check_branch
        %167 = sbr.rel (%p165) target = $region24
      $region23: #{tpu_custom_call.1} parent=5 // pred_region
        // Predicated region
        $region25: #{tpu_custom_call.1} parent=23 // pred_check
          %p168 = pneg %p51
        $region26: #{tpu_custom_call.1} parent=23 // pred_check_branch
          %170 = sbr.rel (%p168) target = $region28
        $region27: #{tpu_custom_call.1} parent=23 // pred_region
          %s171 = sand.u32 %s41, 1
          %s172 = scalar_lea.sflag [#allocation3], %s171
          %s173 = sand.u32 %s41, 1
          %s174 = smul.addr %s173, 8
          %s175 = scalar_lea.vmem [#allocation2], %s174
          %s177 = ssub.s32 128, 128
          %178 = vsyncadd %s172, %s177
          %s179 = smul.addr %s25, 8
          %s180 = smul.addr %s24, 8
          %s181 = sadd.s32 %s179, %s180
          %s182 = smul.addr %s181, 16
          %s183 = scalar_lea.hbm %s0, %s182
          %s185 = sshll.u32 %s175, 4
          %s186 = int_to_ptr.vmem [resolvable:$true] %s185
          %188 = dma.hbm_to_vmem [thread:$0]  %s183, 128, %s186, %s172
        $region28: #{tpu_custom_call.1} parent=23 // pred_fallthru
          _
      $region24: #{tpu_custom_call.1} parent=5 // pred_fallthru
        _
      %p189 = scmp.le.s32.totalorder 1, %s17
      %p190 = scmp.lt.s32.totalorder %s17, 3
      %p191 = pnand %p189, %p190
      %p192 = pneg %p191
      // Predicated region
      $region29: #{tpu_custom_call.1} parent=5 // pred_check
        _
      $region30: #{tpu_custom_call.1} parent=5 // pred_check_branch
        %194 = sbr.rel (%p191) target = $region32
      $region31: #{tpu_custom_call.1} parent=5 // pred_region
        %s195 = ssub.s32 %s17, 1
        %s196 = sand.u32 %s44, 1
        %s197 = scalar_lea.sflag [#allocation3], %s196
        %s198 = sand.u32 %s44, 1
        %s199 = smul.addr %s198, 8
        %s200 = scalar_lea.vmem [#allocation2], %s199
        // Predicated region
        $region33: #{tpu_custom_call.1} parent=31 // pred_check
          %p201 = pneg %p57
        $region34: #{tpu_custom_call.1} parent=31 // pred_check_branch
          %203 = sbr.rel (%p201) target = $region36
        $region35: #{tpu_custom_call.1} parent=31 // pred_region
          %204 = dma.done %s197, 128
        $region36: #{tpu_custom_call.1} parent=31 // pred_fallthru
          _
        // Predicated region
        $region37: #{tpu_custom_call.1} parent=31 // pred_check
          %p205 = pneg %p78
        $region38: #{tpu_custom_call.1} parent=31 // pred_check_branch
          %207 = sbr.rel (%p205) target = $region40
        $region39: #{tpu_custom_call.1} parent=31 // pred_region
          %208 = dma.done [#allocation5], 128
        $region40: #{tpu_custom_call.1} parent=31 // pred_fallthru
          _
        // Predicated region
        $region41: #{tpu_custom_call.1} parent=31 // pred_check
          %p209 = pneg %p99
        $region42: #{tpu_custom_call.1} parent=31 // pred_check_branch
          %211 = sbr.rel (%p209) target = $region44
        $region43: #{tpu_custom_call.1} parent=31 // pred_region
          %212 = dma.done [#allocation8], 16
        $region44: #{tpu_custom_call.1} parent=31 // pred_fallthru
          _
        %213 = sfence
        %s214 = sand.u32 %s44, 1
        %s215 = scalar_lea.sflag [#allocation3], %s214
        %s216 = sand.u32 %s44, 1
        %s217 = smul.addr %s216, 8
        %s218 = scalar_lea.vmem [#allocation2], %s217
        %p219 = pneg %p57
        %p220 = pneg %p54
        %p221 = pneg %p78
        %p222 = pneg %p75
        %p223 = pneg %p99
        %p224 = pneg %p96
        %p225 = pneg %p127
        %p226 = pneg %p124
        %s227 = sand.u32 %s114, 1
        %s228 = scalar_lea.sflag [#allocation4], %s227
        %s229 = sand.u32 %s114, 1
        %s230 = smul.addr %s229, 16
        %s231 = scalar_lea.vmem [#allocation9], %s230
        %s232 = sld [smem:[#allocation7]]
        %s233 = sld [smem:[#allocation6]]
        %v234 = vld [vmem:[%s200] sm:$0x3]
        %v235 = vstv %s233
        %v236 = vmul.f32 %v235, %v234
        %v237 = vstv %s232
        %v238 = vadd.f32 %v237, %v236
        %s239 = sld [smem:[#allocation6 + $0x1]]
        %v240 = vld [vmem:[%s200 + $0x2] sm:$0x3]
        %v241 = vstv %s239
        %v242 = vmul.f32 %v241, %v240
        %v243 = vadd.f32 %v238, %v242
        %s244 = sld [smem:[#allocation6 + $0x2]]
        %v245 = vld [vmem:[%s200 + $0x4] sm:$0x3]
        %v246 = vstv %s244
        %v247 = vmul.f32 %v246, %v245
        %v248 = vadd.f32 %v243, %v247
        %s249 = sld [smem:[#allocation6 + $0x3]]
        %v250 = vld [vmem:[%s200 + $0x6] sm:$0x3]
        %v251 = vstv %s249
        %v252 = vmul.f32 %v251, %v250
        %v253 = vadd.f32 %v248, %v252
        %v254 = vlaneseq
        %vm255 = vcmp.ge.s32.totalorder %v254, 0
        %vm256 = vcmp.lt.s32.totalorder %v254, 256
        %vm257 = vmand %vm255, %vm256
        %258 = vst.msk [vmem:[%s231] sm:$0x3] %vm257, %v253
        %s259 = sld [smem:[#allocation7 + $0x1]]
        %s260 = sld [smem:[#allocation6 + $0x80]]
        %v261 = vld [vmem:[%s200] sm:$0x3]
        %v262 = vstv %s260
        %v263 = vmul.f32 %v262, %v261
        %v264 = vstv %s259
        %v265 = vadd.f32 %v264, %v263
        %s266 = sld [smem:[#allocation6 + $0x81]]
        %v267 = vld [vmem:[%s200 + $0x2] sm:$0x3]
        %v268 = vstv %s266
        %v269 = vmul.f32 %v268, %v267
        %v270 = vadd.f32 %v265, %v269
        %s271 = sld [smem:[#allocation6 + $0x82]]
        %v272 = vld [vmem:[%s200 + $0x4] sm:$0x3]
        %v273 = vstv %s271
        %v274 = vmul.f32 %v273, %v272
        %v275 = vadd.f32 %v270, %v274
        %s276 = sld [smem:[#allocation6 + $0x83]]
        %v277 = vld [vmem:[%s200 + $0x6] sm:$0x3]
        %v278 = vstv %s276
        %v279 = vmul.f32 %v278, %v277
        %v280 = vadd.f32 %v275, %v279
        %281 = vst.msk [vmem:[%s231 + $0x2] sm:$0x3] %vm257, %v280
        %s282 = sld [smem:[#allocation7 + $0x2]]
        %s283 = sld [smem:[#allocation6 + $0x100]]
        %v284 = vld [vmem:[%s200] sm:$0x3]
        %v285 = vstv %s283
        %v286 = vmul.f32 %v285, %v284
        %v287 = vstv %s282
        %v288 = vadd.f32 %v287, %v286
        %s289 = sld [smem:[#allocation6 + $0x101]]
        %v290 = vld [vmem:[%s200 + $0x2] sm:$0x3]
        %v291 = vstv %s289
        %v292 = vmul.f32 %v291, %v290
        %v293 = vadd.f32 %v288, %v292
        %s294 = sld [smem:[#allocation6 + $0x102]]
        %v295 = vld [vmem:[%s200 + $0x4] sm:$0x3]
        %v296 = vstv %s294
        %v297 = vmul.f32 %v296, %v295
        %v298 = vadd.f32 %v293, %v297
        %s299 = sld [smem:[#allocation6 + $0x103]]
        %v300 = vld [vmem:[%s200 + $0x6] sm:$0x3]
        %v301 = vstv %s299
        %v302 = vmul.f32 %v301, %v300
        %v303 = vadd.f32 %v298, %v302
        %304 = vst.msk [vmem:[%s231 + $0x4] sm:$0x3] %vm257, %v303
        %s305 = sld [smem:[#allocation7 + $0x3]]
        %s306 = sld [smem:[#allocation6 + $0x180]]
        %v307 = vld [vmem:[%s200] sm:$0x3]
        %v308 = vstv %s306
        %v309 = vmul.f32 %v308, %v307
        %v310 = vstv %s305
        %v311 = vadd.f32 %v310, %v309
        %s312 = sld [smem:[#allocation6 + $0x181]]
        %v313 = vld [vmem:[%s200 + $0x2] sm:$0x3]
        %v314 = vstv %s312
        %v315 = vmul.f32 %v314, %v313
        %v316 = vadd.f32 %v311, %v315
        %s317 = sld [smem:[#allocation6 + $0x182]]
        %v318 = vld [vmem:[%s200 + $0x4] sm:$0x3]
        %v319 = vstv %s317
        %v320 = vmul.f32 %v319, %v318
        %v321 = vadd.f32 %v316, %v320
        %s322 = sld [smem:[#allocation6 + $0x183]]
        %v323 = vld [vmem:[%s200 + $0x6] sm:$0x3]
        %v324 = vstv %s322
        %v325 = vmul.f32 %v324, %v323
        %v326 = vadd.f32 %v321, %v325
        %327 = vst.msk [vmem:[%s231 + $0x6] sm:$0x3] %vm257, %v326
        %s328 = sld [smem:[#allocation7 + $0x4]]
        %s329 = sld [smem:[#allocation6 + $0x200]]
        %v330 = vld [vmem:[%s200] sm:$0x3]
        %v331 = vstv %s329
        %v332 = vmul.f32 %v331, %v330
        %v333 = vstv %s328
        %v334 = vadd.f32 %v333, %v332
        %s335 = sld [smem:[#allocation6 + $0x201]]
        %v336 = vld [vmem:[%s200 + $0x2] sm:$0x3]
        %v337 = vstv %s335
        %v338 = vmul.f32 %v337, %v336
        %v339 = vadd.f32 %v334, %v338
        %s340 = sld [smem:[#allocation6 + $0x202]]
        %v341 = vld [vmem:[%s200 + $0x4] sm:$0x3]
        %v342 = vstv %s340
        %v343 = vmul.f32 %v342, %v341
        %v344 = vadd.f32 %v339, %v343
        %s345 = sld [smem:[#allocation6 + $0x203]]
        %v346 = vld [vmem:[%s200 + $0x6] sm:$0x3]
        %v347 = vstv %s345
        %v348 = vmul.f32 %v347, %v346
        %v349 = vadd.f32 %v344, %v348
        %350 = vst.msk [vmem:[%s231 + $0x8] sm:$0x3] %vm257, %v349
        %s351 = sld [smem:[#allocation7 + $0x5]]
        %s352 = sld [smem:[#allocation6 + $0x280]]
        %v353 = vld [vmem:[%s200] sm:$0x3]
        %v354 = vstv %s352
        %v355 = vmul.f32 %v354, %v353
        %v356 = vstv %s351
        %v357 = vadd.f32 %v356, %v355
        %s358 = sld [smem:[#allocation6 + $0x281]]
        %v359 = vld [vmem:[%s200 + $0x2] sm:$0x3]
        %v360 = vstv %s358
        %v361 = vmul.f32 %v360, %v359
        %v362 = vadd.f32 %v357, %v361
        %s363 = sld [smem:[#allocation6 + $0x282]]
        %v364 = vld [vmem:[%s200 + $0x4] sm:$0x3]
        %v365 = vstv %s363
        %v366 = vmul.f32 %v365, %v364
        %v367 = vadd.f32 %v362, %v366
        %s368 = sld [smem:[#allocation6 + $0x283]]
        %v369 = vld [vmem:[%s200 + $0x6] sm:$0x3]
        %v370 = vstv %s368
        %v371 = vmul.f32 %v370, %v369
        %v372 = vadd.f32 %v367, %v371
        %373 = vst.msk [vmem:[%s231 + $0xa] sm:$0x3] %vm257, %v372
        %s374 = sld [smem:[#allocation7 + $0x6]]
        %s375 = sld [smem:[#allocation6 + $0x300]]
        %v376 = vld [vmem:[%s200] sm:$0x3]
        %v377 = vstv %s375
        %v378 = vmul.f32 %v377, %v376
        %v379 = vstv %s374
        %v380 = vadd.f32 %v379, %v378
        %s381 = sld [smem:[#allocation6 + $0x301]]
        %v382 = vld [vmem:[%s200 + $0x2] sm:$0x3]
        %v383 = vstv %s381
        %v384 = vmul.f32 %v383, %v382
        %v385 = vadd.f32 %v380, %v384
        %s386 = sld [smem:[#allocation6 + $0x302]]
        %v387 = vld [vmem:[%s200 + $0x4] sm:$0x3]
        %v388 = vstv %s386
        %v389 = vmul.f32 %v388, %v387
        %v390 = vadd.f32 %v385, %v389
        %s391 = sld [smem:[#allocation6 + $0x303]]
        %v392 = vld [vmem:[%s200 + $0x6] sm:$0x3]
        %v393 = vstv %s391
        %v394 = vmul.f32 %v393, %v392
        %v395 = vadd.f32 %v390, %v394
        %396 = vst.msk [vmem:[%s231 + $0xc] sm:$0x3] %vm257, %v395
        %s397 = sld [smem:[#allocation7 + $0x7]]
        %s398 = sld [smem:[#allocation6 + $0x380]]
        %v399 = vld [vmem:[%s200] sm:$0x3]
        %v400 = vstv %s398
        %v401 = vmul.f32 %v400, %v399
        %v402 = vstv %s397
        %v403 = vadd.f32 %v402, %v401
        %s404 = sld [smem:[#allocation6 + $0x381]]
        %v405 = vld [vmem:[%s200 + $0x2] sm:$0x3]
        %v406 = vstv %s404
        %v407 = vmul.f32 %v406, %v405
        %v408 = vadd.f32 %v403, %v407
        %s409 = sld [smem:[#allocation6 + $0x382]]
        %v410 = vld [vmem:[%s200 + $0x4] sm:$0x3]
        %v411 = vstv %s409
        %v412 = vmul.f32 %v411, %v410
        %v413 = vadd.f32 %v408, %v412
        %s414 = sld [smem:[#allocation6 + $0x383]]
        %v415 = vld [vmem:[%s200 + $0x6] sm:$0x3]
        %v416 = vstv %s414
        %v417 = vmul.f32 %v416, %v415
        %v418 = vadd.f32 %v413, %v417
        %419 = vst.msk [vmem:[%s231 + $0xe] sm:$0x3] %vm257, %v418
        %s420 = sand.u32 %s114, 1
        %s421 = scalar_lea.sflag [#allocation4], %s420
        %s422 = sand.u32 %s114, 1
        %s423 = smul.addr %s422, 16
        %s424 = scalar_lea.vmem [#allocation9], %s423
        // Predicated region
        $region45: #{tpu_custom_call.1} parent=31 // pred_check
          %p425 = pneg %p124
        $region46: #{tpu_custom_call.1} parent=31 // pred_check_branch
          %427 = sbr.rel (%p425) target = $region48
        $region47: #{tpu_custom_call.1} parent=31 // pred_region
          %s429 = ssub.s32 256, 256
          %430 = vsyncadd %s421, %s429
          %s431 = smul.addr %s27, 16
          %s432 = smul.addr %s26, 16
          %s433 = sadd.s32 %s431, %s432
          %s434 = smul.addr %s433, 16
          %s435 = scalar_lea.hbm %s3, %s434
          %s437 = sshll.u32 %s424, 4
          %s438 = int_to_ptr.vmem [resolvable:$true] %s437
          %440 = dma.vmem_to_hbm [thread:$0]  %s438, 256, %s435, %s421
        $region48: #{tpu_custom_call.1} parent=31 // pred_fallthru
          _
      $region32: #{tpu_custom_call.1} parent=5 // pred_fallthru
        _
      %p441 = scmp.le.s32.totalorder 2, %s17
      // Predicated region
      $region49: #{tpu_custom_call.1} parent=5 // pred_check
        %p442 = pneg %p441
      $region50: #{tpu_custom_call.1} parent=5 // pred_check_branch
        %444 = sbr.rel (%p442) target = $region52
      $region51: #{tpu_custom_call.1} parent=5 // pred_region
        %s445 = ssub.s32 %s17, 2
        // Predicated region
        $region53: #{tpu_custom_call.1} parent=51 // pred_check
          %p446 = pneg %p130
        $region54: #{tpu_custom_call.1} parent=51 // pred_check_branch
          %448 = sbr.rel (%p446) target = $region56
        $region55: #{tpu_custom_call.1} parent=51 // pred_region
          %s449 = sand.u32 %s115, 1
          %s450 = scalar_lea.sflag [#allocation4], %s449
          %s451 = sand.u32 %s115, 1
          %s452 = smul.addr %s451, 16
          %s453 = scalar_lea.vmem [#allocation9], %s452
          %454 = dma.done %s450, 256
        $region56: #{tpu_custom_call.1} parent=51 // pred_fallthru
          _
      $region52: #{tpu_custom_call.1} parent=5 // pred_fallthru
        _
    $region6: #{tpu_custom_call.1} parent=1 // loop_footer
      %s21 = sadd.s32 1, %s17
    $region7: #{tpu_custom_call.1} parent=1 // loop_footer_branch
      %16 = sbr.rel target = $region3
    $region8: #{tpu_custom_call.1} parent=1 // loop_exit
      _
    %455 = vsyncpa [#allocation3], 1
    %s456 = scalar_lea.sflag [#allocation3], 1
    %457 = vsyncpa %s456, 1
    %458 = vsyncpa [#allocation4], 1
    %s459 = scalar_lea.sflag [#allocation4], 1
    %460 = vsyncpa %s459, 1
    %461 = vsyncpa [#allocation5], 1
    %s462 = scalar_lea.sflag [#allocation5], 1
    %463 = vsyncpa %s462, 1
    %464 = vsyncpa [#allocation8], 1

</llo_original>
